<compile_context>
chip_gen: v6e
topology: v6e:2x2x1
jax: 0.10.0
libtpu: 0.0.40
codegen_flags: <defaults>
</compile_context>

<pallas_src>
import jax
import jax.numpy as jnp
from jax import lax
from jax.experimental import pallas as pl
from jax.experimental.pallas import tpu as pltpu


_EPS = 1e-5


# --------------------------------------------------------------------------
# Generation-aware sizing
# --------------------------------------------------------------------------
def _vmem_capacity_bytes():
    try:
        return int(pltpu.get_tpu_info().vmem_capacity_bytes)
    except Exception:
        return 64 << 20  # conservative fallback (v7x physical VMEM)


def _choose_tk(nc, hw, itemsize, vmem_capacity):
    """Pick the spatial tile width TK from the actual input itemsize.

    v5e/v6e (128 MiB VMEM): 16 MiB double-buffered content budget, TK <= 4096.
    v7x     ( 64 MiB VMEM):  8 MiB budget, TK <= 2048.
    Block dim == full array dim is always layout-legal, otherwise TK is a
    multiple of 128.
    """
    if vmem_capacity >= (100 << 20):
        tile_budget, tk_max = 16 << 20, 4096
    else:
        tile_budget, tk_max = 8 << 20, 2048
    bytes_per_col = 2 * nc * itemsize          # double-buffered content tile
    if hw <= tk_max and hw * bytes_per_col <= tile_budget:
        return hw                              # single full-width tile, no mask
    if hw < 128:
        return hw
    tk = tile_budget // bytes_per_col
    tk = max(128, (min(tk, tk_max) // 128) * 128)
    return int(min(tk, (hw // 128) * 128))


# --------------------------------------------------------------------------
# Kernel
# --------------------------------------------------------------------------
def _make_kernel(hw, tk, needs_mask, gram_dtype, track_sumsq):
    # Width of the final (partial) tile — only tile that needs masking.
    last_valid = hw % tk if (hw % tk) != 0 else tk

    def kernel(c_ref, gram_ref, rowsum_ref, *rest):
        k = pl.program_id(0)

        @pl.when(k == 0)
        def _init():
            gram_ref[...] = jnp.zeros_like(gram_ref)
            rowsum_ref[...] = jnp.zeros_like(rowsum_ref)
            if track_sumsq:
                rest[0][...] = jnp.zeros_like(rest[0])

        c = c_ref[...]                         # native dtype (f32 or bf16)

        if needs_mask:
            # Gate the iota/compare/select to the last grid step only; it also
            # zeroes the Pallas-padded (uninitialized) columns of that block
            # before both the sums and the gram matmul.
            def _mask(x):
                col = lax.broadcasted_iota(jnp.int32, x.shape, 1)
                return jnp.where(col < last_valid, x, jnp.zeros_like(x))

            c = lax.cond(k == pl.num_programs(0) - 1, _mask, lambda x: x, c)

        # Streaming moments in f32 (VPU path).  Note: single-pass variance
        # (sumsq - HW*mean^2) can lose digits for very large HW with strongly
        # non-centered features; acceptable for a loss scalar at VGG scales.
        c32 = c.astype(jnp.float32)
        rowsum_ref[...] += jnp.sum(c32, axis=-1, keepdims=True)
        if track_sumsq:
            rest[0][...] += jnp.sum(c32 * c32, axis=-1, keepdims=True)

        # One gram accumulate per step on the MXU, f32 accumulation.
        cg = c if c.dtype == gram_dtype else c.astype(gram_dtype)
        gram_ref[...] += lax.dot_general(
            cg, cg, (((1,), (1,)), ((), ())),
            preferred_element_type=jnp.float32)

    return kernel


# --------------------------------------------------------------------------
# Streaming gram / moment statistics (the Pallas part)
# --------------------------------------------------------------------------
def _adain_gram_stats(content_2d, *, gram_input_dtype, tk=None):
    nc, hw = content_2d.shape
    itemsize = content_2d.dtype.itemsize
    vmem_cap = _vmem_capacity_bytes()

    if tk is None:
        tk = _choose_tk(nc, hw, itemsize, vmem_cap)
    tk = int(min(tk, hw))
    if tk != hw and (tk % 128) != 0:           # keep user overrides layout-legal
        tk = hw if hw < 128 else max(128, (tk // 128) * 128)
        tk = min(tk, hw)

    num_k = pl.cdiv(hw, tk)
    needs_mask = (hw % tk) != 0

    gram_dtype = jnp.dtype(gram_input_dtype)
    # diag(gram_sum) already equals sum(c^2) exactly when the MXU feed is not a
    # lossy downcast of the content dtype; keep the explicit sumsq pass only
    # when it is (e.g. f32 content fed as bf16).
    track_sumsq = (gram_dtype != content_2d.dtype)

    kernel = _make_kernel(hw, tk, needs_mask, gram_dtype, track_sumsq)

    out_shape = [jax.ShapeDtypeStruct((nc, nc), jnp.float32),
                 jax.ShapeDtypeStruct((nc, 1), jnp.float32)]
    out_specs = [pl.BlockSpec((nc, nc), lambda k: (0, 0)),
                 pl.BlockSpec((nc, 1), lambda k: (0, 0))]
    if track_sumsq:
        out_shape.append(jax.ShapeDtypeStruct((nc, 1), jnp.float32))
        out_specs.append(pl.BlockSpec((nc, 1), lambda k: (0, 0)))

    # Scoped-VMEM limit with headroom, capped by the actual chip capacity
    # (v7x only has 64 MiB physical VMEM).
    est = (2 * nc * tk * itemsize              # double-buffered content tiles
           + 2 * nc * nc * 4                   # resident gram accumulator
           + 8 * nc * 4                        # moment accumulators
           + (512 << 10))
    cap = int(0.85 * vmem_cap)
    vmem_limit = int(min(cap, max(32 << 20, 2 * est)))
    vmem_limit = max(vmem_limit, min(cap, est + (1 << 20)))

    outs = pl.pallas_call(
        kernel,
        out_shape=tuple(out_shape),
        grid_spec=pltpu.PrefetchScalarGridSpec(
            num_scalar_prefetch=0,
            grid=(num_k,),
            in_specs=[pl.BlockSpec((nc, tk), lambda k: (0, k))],  # streamed C
            out_specs=tuple(out_specs),
            scratch_shapes=[],
        ),
        compiler_params=pltpu.CompilerParams(
            dimension_semantics=("arbitrary",),
            vmem_limit_bytes=vmem_limit,
        ),
    )(content_2d)

    if track_sumsq:
        gram_sum, rowsum, sumsq = outs
    else:
        gram_sum, rowsum = outs
        sumsq = jnp.diagonal(gram_sum).reshape(nc, 1)
    return gram_sum, rowsum, sumsq


# --------------------------------------------------------------------------
# Full loss (finalize runs in plain JAX — keeps target gram out of VMEM)
# --------------------------------------------------------------------------
def adain_style_loss_pallas(render_nchw, s_mean, s_std, target_gram, *,
                            gram_input_dtype=jnp.bfloat16, tk=None, eps=_EPS):
    """Scalar AdaIn style loss for `render` vs precomputed style constants.

    render_nchw : (N, C, H, W) content features (f32 or bf16; bf16 is kept
                  bf16 end-to-end — only the moments path upcasts in-kernel).
    s_mean/s_std: (N*C, 1) per-row style mean / std (f32).
    target_gram : (N*C, N*C) precomputed style gram (f32).
    """
    n, ch, h, w = render_nchw.shape
    nc = n * ch
    hw = h * w
    assert s_mean.shape == (nc, 1) and s_std.shape == (nc, 1)
    assert target_gram.shape == (nc, nc)

    c2d = jnp.reshape(render_nchw, (nc, hw))   # metadata-only reshape

    gram_sum, rowsum, sumsq = _adain_gram_stats(
        c2d, gram_input_dtype=gram_input_dtype, tk=tk)

    hw_f = float(hw)
    c_mean = rowsum * (1.0 / hw_f)
    # torch.var(dim=2) is unbiased (divide by HW-1); eps added before sqrt.
    c_var = (sumsq - hw_f * c_mean * c_mean) / (hw_f - 1.0) + eps
    c_std = jnp.sqrt(c_var)

    content_loss = (jnp.mean((s_mean - c_mean) ** 2)
                    + jnp.mean((s_std - c_std) ** 2))

    # transformed = a * c + b (per-row affine) with a = s_std/c_std and
    # b = s_mean - a*c_mean, hence the transformed gram is reconstructed
    # algebraically from the raw content gram and first moments:
    #   G = (a a^T) o gram_sum + (a o rowsum) b^T + b (a o rowsum)^T + HW b b^T
    a = s_std / c_std
    b = s_mean - a * c_mean
    ar = a * rowsum
    g = (gram_sum * (a @ a.T) + ar @ b.T + b @ ar.T
         + hw_f * (b @ b.T)) * (1.0 / float(nc * hw))

    style_loss = jnp.mean((g - target_gram) ** 2)
    return content_loss + 10.0 * style_loss


# --------------------------------------------------------------------------
# Module mirror of the PyTorch AdaInStyleLoss
# --------------------------------------------------------------------------
class AdaInStyleLoss:
    """JAX mirror: forward(render) -> render, sets self.loss.

    Style-side constants (mean, std, gram) are precomputed once at init, which
    matches the PyTorch module (the target gram is a detached constant and the
    style feature never changes).  Default MXU feed is bf16 (f32 accumulation);
    pass gram_input_dtype=jnp.float32 for full f32 parity at ~3-6x MXU cost.
    """

    def __init__(self, target_feature, *, gram_input_dtype=jnp.bfloat16,
                 eps=_EPS):
        sf = jnp.asarray(target_feature, dtype=jnp.float32)
        n, c, h, w = sf.shape
        s2d = sf.reshape(n * c, h * w)
        self._nc_shape = (n, c)
        self.style_feature = sf
        self.s_mean = jnp.mean(s2d, axis=1, keepdims=True)
        self.s_std = jnp.sqrt(jnp.var(s2d, axis=1, ddof=1, keepdims=True) + eps)
        self.target = (s2d @ s2d.T) / float(n * c * h * w)
        self.gram_input_dtype = gram_input_dtype
        self.loss = None

    def forward(self, render):
        # Matches the PyTorch assert: only (N, C) must agree; spatial may differ.
        assert render.shape[:2] == self._nc_shape
        self.loss = adain_style_loss_pallas(
            render, self.s_mean, self.s_std, self.target,
            gram_input_dtype=self.gram_input_dtype)
        return render

    __call__ = forward


# --------------------------------------------------------------------------
# Pure-JAX reference (for correctness check)
# --------------------------------------------------------------------------
def _ref_loss(render, style, eps=_EPS):
    render = jnp.asarray(render, jnp.float32)
    style = jnp.asarray(style, jnp.float32)

    def stats(x):
        nn, cc = x.shape[:2]
        f = x.reshape(nn, cc, -1)
        var = jnp.var(f, axis=2, ddof=1) + eps
        return (jnp.mean(f, axis=2).reshape(nn, cc, 1, 1),
                jnp.sqrt(var).reshape(nn, cc, 1, 1))

    s_mean, s_std = stats(style)
    c_mean, c_std = stats(render)
    transformed = (render - c_mean) / c_std * s_std + s_mean
    content = jnp.mean((s_mean - c_mean) ** 2) + jnp.mean((s_std - c_std) ** 2)

    def gram(x):
        a, b, cc, d = x.shape
        f = x.reshape(a * b, cc * d)
        return (f @ f.T) / (a * b * cc * d)

    style_l = jnp.mean((gram(transformed) - gram(style)) ** 2)
    return content + 10.0 * style_l


if __name__ == "__main__":
    key = jax.random.PRNGKey(0)
    k1, k2 = jax.random.split(key)
    N, C, H, W = 2, 4, 16, 16
    target_feature = jax.random.normal(k1, (N, C, H, W), dtype=jnp.float32)
    render = jax.random.normal(k2, (N, C, H, W), dtype=jnp.float32)

    ref = _ref_loss(render, target_feature)

    # 1) Default module: bf16 MXU feed, f32 accumulation (loose tolerance).
    module = AdaInStyleLoss(target_feature)
    out = module(render)
    jax.block_until_ready(out)
    loss = jax.block_until_ready(module.loss)
    assert out.shape == render.shape
    assert jnp.allclose(loss, ref, rtol=5e-2, atol=1e-3), (loss, ref)

    # 2) f32 MXU feed (diag-as-sumsq path): tight parity with the f32 reference.
    module_f32 = AdaInStyleLoss(target_feature, gram_input_dtype=jnp.float32)
    module_f32(render)
    loss_f32 = jax.block_until_ready(module_f32.loss)
    assert jnp.allclose(loss_f32, ref, rtol=1e-4, atol=1e-5), (loss_f32, ref)

    # 3) Multi-tile streaming path (small tk forces grid > 1), f32 feed.
    loss_tiled = jax.block_until_ready(
        adain_style_loss_pallas(render, module.s_mean, module.s_std,
                                module.target, gram_input_dtype=jnp.float32,
                                tk=128))
    assert jnp.allclose(loss_tiled, ref, rtol=1e-4, atol=1e-5), (loss_tiled, ref)

    # 4) Remainder-tile masking path (HW not a multiple of the tile width).
    t2 = jax.random.normal(k1, (1, 8, 18, 18), dtype=jnp.float32)
    r2 = jax.random.normal(k2, (1, 8, 18, 18), dtype=jnp.float32)
    m2 = AdaInStyleLoss(t2, gram_input_dtype=jnp.float32)
    ref2 = _ref_loss(r2, t2)
    loss_masked = jax.block_until_ready(
        adain_style_loss_pallas(r2, m2.s_mean, m2.s_std, m2.target,
                                gram_input_dtype=jnp.float32, tk=128))
    assert jnp.allclose(loss_masked, ref2, rtol=1e-4, atol=1e-5), (loss_masked, ref2)

    # 4b) Masking path with the default bf16 feed (exercises the explicit
    #     sumsq accumulator together with grid > 1 + remainder mask).
    loss_masked_bf16 = jax.block_until_ready(
        adain_style_loss_pallas(r2, m2.s_mean, m2.s_std, m2.target, tk=128))
    assert jnp.allclose(loss_masked_bf16, ref2, rtol=5e-2, atol=1e-3), (
        loss_masked_bf16, ref2)

    # 5) bf16 content end-to-end (raw bf16 fed to the MXU, no pre-kernel upcast).
    render_bf16 = render.astype(jnp.bfloat16)
    loss_bf16 = jax.block_until_ready(
        adain_style_loss_pallas(render_bf16, module.s_mean, module.s_std,
                                module.target, tk=128))
    assert jnp.allclose(loss_bf16, ref, rtol=5e-2, atol=1e-3), (loss_bf16, ref)

    print("KERNEL_OK")
</pallas_src>

<mosaic_0001>
module attributes {stable_mosaic.version = 11 : i64} {
  func.func @kernel(%arg0: i32, %arg1: memref<8x256xf32, #tpu.memory_space<vmem>>, %arg2: memref<8x8xf32, #tpu.memory_space<vmem>>, %arg3: memref<8x1xf32, #tpu.memory_space<vmem>>, %arg4: memref<8x1xf32, #tpu.memory_space<vmem>>) attributes {dimension_semantics = [#tpu.dimension_semantics<arbitrary>], iteration_bounds = array<i64: 1>, scalar_prefetch = 0 : i64, scratch_operands = 0 : i64, tpu.core_type = #tpu.core_type<tc>, window_params = [{transform_indices = @transform_0, window_bounds = array<i64: 8, 256>}, {pipeline_mode = #tpu.pipeline_mode<synchronous>, transform_indices = @transform_1, window_bounds = array<i64: 8, 8>}, {pipeline_mode = #tpu.pipeline_mode<synchronous>, transform_indices = @transform_2, window_bounds = array<i64: 8, 1>}, {pipeline_mode = #tpu.pipeline_mode<synchronous>, transform_indices = @transform_3, window_bounds = array<i64: 8, 1>}]} {
    %c0_i32 = arith.constant 0 : i32
    %0 = arith.cmpi eq, %arg0, %c0_i32 : i32
    %1 = arith.extui %0 : i1 to i32
    %c0_i32_0 = arith.constant 0 : i32
    %2 = arith.cmpi ne, %1, %c0_i32_0 : i32
    scf.if %2 {
      %cst_16 = arith.constant 0.000000e+00 : f32
      %20 = vector.broadcast %cst_16 : f32 to vector<8x8xf32>
      %c0_17 = arith.constant 0 : index
      %c0_18 = arith.constant 0 : index
      %21 = vector.load %arg2[%c0_17, %c0_18] : memref<8x8xf32, #tpu.memory_space<vmem>>, vector<8x8xf32>
      tpu.vector_store %arg2[%c0_17, %c0_18], %20 {strides = array<i32>} : memref<8x8xf32, #tpu.memory_space<vmem>>, vector<8x8xf32>,
      %cst_19 = arith.constant 0.000000e+00 : f32
      %22 = vector.broadcast %cst_19 : f32 to vector<8x1xf32>
      %c0_20 = arith.constant 0 : index
      %c0_21 = arith.constant 0 : index
      %23 = vector.load %arg3[%c0_20, %c0_21] : memref<8x1xf32, #tpu.memory_space<vmem>>, vector<8x1xf32>
      tpu.vector_store %arg3[%c0_20, %c0_21], %22 {strides = array<i32>} : memref<8x1xf32, #tpu.memory_space<vmem>>, vector<8x1xf32>,
      %cst_22 = arith.constant 0.000000e+00 : f32
      %24 = vector.broadcast %cst_22 : f32 to vector<8x1xf32>
      %c0_23 = arith.constant 0 : index
      %c0_24 = arith.constant 0 : index
      %25 = vector.load %arg4[%c0_23, %c0_24] : memref<8x1xf32, #tpu.memory_space<vmem>>, vector<8x1xf32>
      tpu.vector_store %arg4[%c0_23, %c0_24], %24 {strides = array<i32>} : memref<8x1xf32, #tpu.memory_space<vmem>>, vector<8x1xf32>,
    } else {
    }
    %c0 = arith.constant 0 : index
    %c0_1 = arith.constant 0 : index
    %3 = vector.load %arg1[%c0, %c0_1] : memref<8x256xf32, #tpu.memory_space<vmem>>, vector<8x256xf32>
    %c0_2 = arith.constant 0 : index
    %c0_3 = arith.constant 0 : index
    %4 = vector.load %arg3[%c0_2, %c0_3] : memref<8x1xf32, #tpu.memory_space<vmem>>, vector<8x1xf32>
    %cst = arith.constant dense<0.000000e+00> : vector<8xf32>
    %5 = vector.multi_reduction <add>, %3, %cst [1] : vector<8x256xf32> to vector<8xf32>
    %6 = vector.shape_cast %5 : vector<8xf32> to vector<8x1xf32>
    %7 = arith.addf %4, %6 : vector<8x1xf32>
    %c0_4 = arith.constant 0 : index
    %c0_5 = arith.constant 0 : index
    %8 = vector.load %arg3[%c0_4, %c0_5] : memref<8x1xf32, #tpu.memory_space<vmem>>, vector<8x1xf32>
    tpu.vector_store %arg3[%c0_4, %c0_5], %7 {strides = array<i32>} : memref<8x1xf32, #tpu.memory_space<vmem>>, vector<8x1xf32>,
    %c0_6 = arith.constant 0 : index
    %c0_7 = arith.constant 0 : index
    %9 = vector.load %arg4[%c0_6, %c0_7] : memref<8x1xf32, #tpu.memory_space<vmem>>, vector<8x1xf32>
    %10 = arith.mulf %3, %3 : vector<8x256xf32>
    %cst_8 = arith.constant dense<0.000000e+00> : vector<8xf32>
    %11 = vector.multi_reduction <add>, %10, %cst_8 [1] : vector<8x256xf32> to vector<8xf32>
    %12 = vector.shape_cast %11 : vector<8xf32> to vector<8x1xf32>
    %13 = arith.addf %9, %12 : vector<8x1xf32>
    %c0_9 = arith.constant 0 : index
    %c0_10 = arith.constant 0 : index
    %14 = vector.load %arg4[%c0_9, %c0_10] : memref<8x1xf32, #tpu.memory_space<vmem>>, vector<8x1xf32>
    tpu.vector_store %arg4[%c0_9, %c0_10], %13 {strides = array<i32>} : memref<8x1xf32, #tpu.memory_space<vmem>>, vector<8x1xf32>,
    %15 = arith.truncf %3 : vector<8x256xf32> to vector<8x256xbf16>
    %c0_11 = arith.constant 0 : index
    %c0_12 = arith.constant 0 : index
    %16 = vector.load %arg2[%c0_11, %c0_12] : memref<8x8xf32, #tpu.memory_space<vmem>>, vector<8x8xf32>
    %cst_13 = arith.constant dense<0.000000e+00> : vector<8x8xf32>
    %17 = tpu.matmul %15, %15, %cst_13 {dimension_numbers = #tpu.dot_dimension_numbers<[1], [1], [0], [0], [0, 0, 1, 0], [], []>} : vector<8x256xbf16>, vector<8x256xbf16>, vector<8x8xf32> -> vector<8x8xf32>
    %18 = arith.addf %16, %17 : vector<8x8xf32>
    %c0_14 = arith.constant 0 : index
    %c0_15 = arith.constant 0 : index
    %19 = vector.load %arg2[%c0_14, %c0_15] : memref<8x8xf32, #tpu.memory_space<vmem>>, vector<8x8xf32>
    tpu.vector_store %arg2[%c0_14, %c0_15], %18 {strides = array<i32>} : memref<8x8xf32, #tpu.memory_space<vmem>>, vector<8x8xf32>,
    return
  }
  func.func @transform_0(%arg0: i32) -> (i32, i32) {
    %c0_i32 = arith.constant 0 : i32
    %c0_i32_0 = arith.constant 0 : i32
    return %c0_i32, %arg0 : i32, i32
  }
  func.func @transform_1(%arg0: i32) -> (i32, i32) {
    %c0_i32 = arith.constant 0 : i32
    %c0_i32_0 = arith.constant 0 : i32
    %c0_i32_1 = arith.constant 0 : i32
    return %c0_i32, %c0_i32_0 : i32, i32
  }
  func.func @transform_2(%arg0: i32) -> (i32, i32) {
    %c0_i32 = arith.constant 0 : i32
    %c0_i32_0 = arith.constant 0 : i32
    %c0_i32_1 = arith.constant 0 : i32
    return %c0_i32, %c0_i32_0 : i32, i32
  }
  func.func @transform_3(%arg0: i32) -> (i32, i32) {
    %c0_i32 = arith.constant 0 : i32
    %c0_i32_0 = arith.constant 0 : i32
    %c0_i32_1 = arith.constant 0 : i32
    return %c0_i32, %c0_i32_0 : i32, i32
  }
}

</mosaic_0001>

<llo_original>
// kernel: tpu_custom_call.1
$region0: #{tpu_custom_call.1}
  #allocation0 [shape = 'u32[]', space=smem, size = 0x4, offset = 0x4, fixed_abs, tag = 'smem constant byte address 0x4 - core index']
  #allocation1 [shape = 'u32[144,128]{1,0:T(1,128)}', space=vmem, size = 0x12000, scoped, tag = 'internal scratch']
  %s0 = inlined_call_operand.hbm [shape: f32[8,256], index: 0, kind: input, shape index: {}]
  %s1 = inlined_call_operand.hbm [shape: f32[8,8], index: 1, kind: output, shape index: {0}]
  %s2 = inlined_call_operand.vmem [shape: f32[8,1], index: 2, kind: output, shape index: {1}]
  %s3 = inlined_call_operand.vmem [shape: f32[8,1], index: 3, kind: output, shape index: {2}]
  %4 = xla_tuple %s1, %s2, %s3
  %s5 = sld [smem:[#allocation0]]
  $region38: #{tpu_custom_call.1} parent=0
    _
  %s7 = ssub.s32 1, %s5
  %s8 = scalar_select 0, %s7, %s5
  $region1: #{tpu_custom_call.1} parent=0
    #allocation2 [shape = 'u8[8192]{0}', space=vmem, size = 0x2000, scoped, tag = 'input window, operand 0, single buffered']
    #allocation3 [shape = 's32[1]{0}', space=sflag, size = 0x4, scoped, tag = 'scoped memory for tpu_custom_call.1']
    #allocation4 [shape = 's32[1]{0}', space=sflag, size = 0x4, scoped, tag = 'scoped memory for tpu_custom_call.1']
    #allocation5 [shape = 'u8[4096]{0}', space=vmem, size = 0x1000, scoped, tag = 'output window, operand 0, single buffered']
    %9 = vsyncpa [#allocation3], 0
    %10 = vsyncpa [#allocation4], 0
    // Predicated region
    $region2: #{tpu_custom_call.1} parent=1 // pred_check
      _
    $region3: #{tpu_custom_call.1} parent=1 // pred_check_branch
      %12 = sbr.rel (0) target = $region5
    $region4: #{tpu_custom_call.1} parent=1 // pred_region
      %s14 = ssub.s32 256, 256
      %15 = vsyncadd [#allocation3], %s14
      %s17 = sshll.u32 [#allocation2], 4
      %s18 = int_to_ptr.vmem [resolvable:$true] %s17
      %20 = dma.hbm_to_vmem [thread:$0]  %s0, 256, %s18, [#allocation3]
    $region5: #{tpu_custom_call.1} parent=1 // pred_fallthru
      _
    // Predicated region
    $region6: #{tpu_custom_call.1} parent=1 // pred_check
      _
    $region7: #{tpu_custom_call.1} parent=1 // pred_check_branch
      %22 = sbr.rel (0) target = $region9
    $region8: #{tpu_custom_call.1} parent=1 // pred_region
      %23 = dma.done [#allocation3], 256
    $region9: #{tpu_custom_call.1} parent=1 // pred_fallthru
      _
    %p25 = scmp.eq.s32.totalorder 0, 0
    // Predicated region
    $region10: #{tpu_custom_call.1} parent=1 // pred_check
      %p26 = pneg %p25
    $region11: #{tpu_custom_call.1} parent=1 // pred_check_branch
      %28 = sbr.rel (%p26) target = $region13
    $region12: #{tpu_custom_call.1} parent=1 // pred_region
      %vm29 = vcmask 64512
      %30 = vst.msk [vmem:[#allocation5] sm:$0xff] %vm29, 0.0
      %vm31 = vcmask 7168
      %32 = vst.msk [vmem:[%s2] sm:$0xff] %vm31, 0.0
      %33 = vst.msk [vmem:[%s3] sm:$0xff] %vm31, 0.0
    $region13: #{tpu_custom_call.1} parent=1 // pred_fallthru
      _
    %v34 = vld [vmem:[#allocation2] sm:$0xff]
    %v35 = vld [vmem:[#allocation2 + $0x8] sm:$0xff]
    %v36 = vld [vmem:[%s2] sm:$0xff]
    %v37 = vadd.f32 %v34, %v35
    %38 = vadd.xlane.f32.xlu0 %v37
    %v39 = vpop.xlane.xlu0 %38
    %v40 = vadd.f32 %v36, %v39
    %vm41 = vcmask 7168
    %42 = vst.msk [vmem:[%s2] sm:$0xff] %vm41, %v40
    %v43 = vld [vmem:[%s3] sm:$0xff]
    %v44 = vmul.f32 %v34, %v34
    %v45 = vmul.f32 %v35, %v35
    %v46 = vadd.f32 %v44, %v45
    %47 = vadd.xlane.f32.xlu0 %v46
    %v48 = vpop.xlane.xlu0 %47
    %v49 = vadd.f32 %v43, %v48
    %50 = vst.msk [vmem:[%s3] sm:$0xff] %vm41, %v49
    %v51 = vpack.c.bf16 %v34, %v34
    %v52 = vpack.c.bf16 %v35, %v35
    %v53 = vld [vmem:[#allocation5] sm:$0xff]
    %54 = vmatprep.subr.bf16.mxu0 0
    %55 = vmatpush1.bf16.xpose.msra.mxu0 0
    %56 = vmatprep.subr.bf16.mxu0 0
    %57 = vmatpush1.bf16.xpose.msra.mxu0 0
    %58 = vmatprep.subr.bf16.mxu0 0
    %59 = vmatpush1.bf16.xpose.msra.mxu0 0
    %60 = vmatprep.subr.bf16.mxu0 0
    %61 = vmatpush1.bf16.xpose.msra.mxu0 0
    %62 = vmatprep.subr.bf16.mxu0 0
    %63 = vmatpush1.bf16.xpose.msra.mxu0 0
    %64 = vmatprep.subr.bf16.mxu0 0
    %65 = vmatpush1.bf16.xpose.msra.mxu0 0
    %66 = vmatprep.subr.bf16.mxu0 0
    %67 = vmatpush1.bf16.xpose.msra.mxu0 0
    %68 = vmatprep.subr.bf16.mxu0 %v52
    %69 = vmatpush1.bf16.xpose.msra.mxu0 %v51
    %70 = vmatprep.subr.bf16.mxu0 0
    %71 = vmatpush2.bf16.xpose.msra.mxu0 0
    %72 = vmatprep.subr.bf16.mxu0 0
    %73 = vmatpush2.bf16.xpose.msra.mxu0 0
    %74 = vmatprep.subr.bf16.mxu0 0
    %75 = vmatpush2.bf16.xpose.msra.mxu0 0
    %76 = vmatprep.subr.bf16.mxu0 0
    %77 = vmatpush2.bf16.xpose.msra.mxu0 0
    %78 = vmatprep.subr.bf16.mxu0 0
    %79 = vmatpush2.bf16.xpose.msra.mxu0 0
    %80 = vmatprep.subr.bf16.mxu0 0
    %81 = vmatpush2.bf16.xpose.msra.mxu0 0
    %82 = vmatprep.subr.bf16.mxu0 0
    %83 = vmatpush2.bf16.xpose.msra.mxu0 0
    %84 = vmatprep.subr.bf16.mxu0 0
    %85 = vmatpush2.bf16.xpose.msra.mxu0 0
    %86 = vmatprep.mubr.bf16.mxu0 %v52
    %87 = vmatmul.mubr.bf16.gmra.mxu0 %v51
    %v88 = vpop.f32.mrf.mxu0
    %v89 = vadd.f32 0.0, %v88
    %v90 = vpop.f32.mrf.mxu0
    %v91 = vpop.f32.mrf.mxu0
    %v92 = vpop.f32.mrf.mxu0
    %93 = vdwg.mxu0
    %v94 = vadd.f32 %v53, %v89
    %vm95 = vcmask 64512
    %96 = vst.msk [vmem:[#allocation5] sm:$0xff] %vm95, %v94
    // Predicated region
    $region14: #{tpu_custom_call.1} parent=1 // pred_check
      _
    $region15: #{tpu_custom_call.1} parent=1 // pred_check_branch
      %98 = sbr.rel (0) target = $region17
    $region16: #{tpu_custom_call.1} parent=1 // pred_region
      %s100 = ssub.s32 128, 128
      %101 = vsyncadd [#allocation4], %s100
      %s103 = sshll.u32 [#allocation5], 4
      %s104 = int_to_ptr.vmem [resolvable:$true] %s103
      %106 = dma.vmem_to_hbm [thread:$0]  %s104, 128, %s1, [#allocation4]
    $region17: #{tpu_custom_call.1} parent=1 // pred_fallthru
      _
    // Predicated region
    $region18: #{tpu_custom_call.1} parent=1 // pred_check
      _
    $region19: #{tpu_custom_call.1} parent=1 // pred_check_branch
      %108 = sbr.rel (0) target = $region21
    $region20: #{tpu_custom_call.1} parent=1 // pred_region
      _
    $region21: #{tpu_custom_call.1} parent=1 // pred_fallthru
      _
    // Predicated region
    $region22: #{tpu_custom_call.1} parent=1 // pred_check
      _
    $region23: #{tpu_custom_call.1} parent=1 // pred_check_branch
      %110 = sbr.rel (0) target = $region25
    $region24: #{tpu_custom_call.1} parent=1 // pred_region
      _
    $region25: #{tpu_custom_call.1} parent=1 // pred_fallthru
      _
    // Predicated region
    $region26: #{tpu_custom_call.1} parent=1 // pred_check
      _
    $region27: #{tpu_custom_call.1} parent=1 // pred_check_branch
      %112 = sbr.rel (0) target = $region29
    $region28: #{tpu_custom_call.1} parent=1 // pred_region
      %113 = dma.done [#allocation4], 128
    $region29: #{tpu_custom_call.1} parent=1 // pred_fallthru
      _
    // Predicated region
    $region30: #{tpu_custom_call.1} parent=1 // pred_check
      _
    $region31: #{tpu_custom_call.1} parent=1 // pred_check_branch
      %115 = sbr.rel (0) target = $region33
    $region32: #{tpu_custom_call.1} parent=1 // pred_region
      _
    $region33: #{tpu_custom_call.1} parent=1 // pred_fallthru
      _
    // Predicated region
    $region34: #{tpu_custom_call.1} parent=1 // pred_check
      _
    $region35: #{tpu_custom_call.1} parent=1 // pred_check_branch
      %117 = sbr.rel (0) target = $region37
    $region36: #{tpu_custom_call.1} parent=1 // pred_region
      _
    $region37: #{tpu_custom_call.1} parent=1 // pred_fallthru
      _
    %118 = vsyncpa [#allocation3], 1
    %119 = vsyncpa [#allocation4], 1

</llo_original>
